<compile_context>
chip_gen: v7x
topology: tpu7x:2x2x1
jax: 0.10.0
libtpu: 0.0.40
codegen_flags: <defaults>
</compile_context>

<pallas_src>
import functools

import jax
import jax.numpy as jnp
from jax.experimental import pallas as pl
from jax.experimental.pallas import tpu as pltpu


def _copy_kernel(x_ref, o_ref):
    # One block in, same block out: HBM -> VMEM -> HBM.
    o_ref[...] = x_ref[...]


def mask_forward(
    edge_index: jax.Array,
    *,
    single_block_max_bytes: int = 4 * 1024 * 1024,   # <= 4 MiB => one block
    tile_lanes: int = 256 * 1024,                     # 2 MiB int32 blocks
):
    """Pallas equivalent of Mask.forward: returns (edge_index, edge_index).

    A single identity copy is produced by the kernel and the same array is
    returned twice (the reference returns the same tensor object twice).
    """
    rows, num_edges = edge_index.shape
    itemsize = jnp.dtype(edge_index.dtype).itemsize
    nbytes = rows * num_edges * itemsize

    if nbytes <= single_block_max_bytes:
        # Single block covering the full array.  A full-extent block shape is
        # always legal (no (8,128) divisibility needed), so no padding/slicing.
        out = pl.pallas_call(
            _copy_kernel,
            out_shape=jax.ShapeDtypeStruct(edge_index.shape, edge_index.dtype),
        )(edge_index)
    else:
        # Tile the lane (E) axis with large contiguous blocks.  Block shape
        # (rows, tile): second-to-last dim equals the full array dim (legal),
        # last dim is a multiple of 128.  The final partial block (if E is not
        # a multiple of `tile`) is handled by Pallas' masked load/store.
        tile = max(128, min(tile_lanes, pl.cdiv(num_edges, 128) * 128))
        grid = (pl.cdiv(num_edges, tile),)
        out = pl.pallas_call(
            _copy_kernel,
            out_shape=jax.ShapeDtypeStruct(edge_index.shape, edge_index.dtype),
            grid=grid,
            in_specs=[pl.BlockSpec((rows, tile), lambda i: (0, i))],
            out_specs=pl.BlockSpec((rows, tile), lambda i: (0, i)),
            compiler_params=pltpu.CompilerParams(
                dimension_semantics=("parallel",)
            ),
        )(edge_index)

    # Reference returns the same tensor twice; return the same array twice.
    return out, out


if __name__ == "__main__":
    key = jax.random.PRNGKey(0)

    # Small edge_index: (2, num_edges) integer tensor, PyG convention.
    num_nodes, num_edges = 16, 8
    edge_index = jax.random.randint(
        key, shape=(2, num_edges), minval=0, maxval=num_nodes, dtype=jnp.int32
    )

    mask_fwd = jax.jit(mask_forward)
    out0, out1 = mask_fwd(edge_index)
    jax.block_until_ready((out0, out1))
    assert out0.shape == edge_index.shape and out1.shape == edge_index.shape
    assert out0.dtype == edge_index.dtype and out1.dtype == edge_index.dtype
    assert bool(jnp.all(out0 == edge_index)) and bool(jnp.all(out1 == edge_index))

    # Exercise the tiled multi-block path (with a partial final block) using
    # small data by forcing tiny thresholds.
    key2 = jax.random.PRNGKey(0)
    edge_index2 = jax.random.randint(
        key2, shape=(2, 1000), minval=0, maxval=64, dtype=jnp.int32
    )
    tiled_fwd = jax.jit(
        functools.partial(mask_forward, single_block_max_bytes=0, tile_lanes=256)
    )
    o0, o1 = tiled_fwd(edge_index2)
    jax.block_until_ready((o0, o1))
    assert bool(jnp.all(o0 == edge_index2)) and bool(jnp.all(o1 == edge_index2))

    print("KERNEL_OK")
</pallas_src>

<mosaic_0001>
module attributes {stable_mosaic.version = 11 : i64} {
  func.func @_copy_kernel(%arg0: memref<2x8xi32, #tpu.memory_space<vmem>>, %arg1: memref<2x8xi32, #tpu.memory_space<vmem>>) attributes {dimension_semantics = [], scalar_prefetch = 0 : i64, scratch_operands = 0 : i64, tpu.core_type = #tpu.core_type<tc>} {
    %c0 = arith.constant 0 : index
    %c0_0 = arith.constant 0 : index
    %0 = vector.load %arg0[%c0, %c0_0] : memref<2x8xi32, #tpu.memory_space<vmem>>, vector<2x8xi32>
    %c0_1 = arith.constant 0 : index
    %c0_2 = arith.constant 0 : index
    %1 = vector.load %arg1[%c0_1, %c0_2] : memref<2x8xi32, #tpu.memory_space<vmem>>, vector<2x8xi32>
    tpu.vector_store %arg1[%c0_1, %c0_2], %0 {strides = array<i32>} : memref<2x8xi32, #tpu.memory_space<vmem>>, vector<2x8xi32>,
    return
  }
}

</mosaic_0001>

<llo_original>
// kernel: mask_forward.1
$region0: #{mask_forward.1}
  #allocation0 [shape = 'u32[]', space=smem, size = 0x4, offset = 0x4, fixed_abs, tag = 'smem constant byte address 0x4 - core index']
  #allocation1 [shape = 'u32[144,128]{1,0:T(1,128)}', space=vmem, size = 0x12000, scoped, tag = 'internal scratch']
  %s0 = inlined_call_operand.hbm [shape: s32[2,8], index: 0, kind: input, shape index: {}]
  %s1 = inlined_call_operand.vmem [shape: s32[2,8], index: 1, kind: output, shape index: {}]
  %s2 = sld [smem:[#allocation0]]
  $region18: #{mask_forward.1} parent=0
    _
  %s4 = ssub.s32 1, %s2
  %s5 = scalar_select 0, %s4, %s2
  $region1: #{mask_forward.1} parent=0
    #allocation2 [shape = 'u8[1024]{0}', space=vmem, size = 0x400, scoped, tag = 'input window, operand 0, single buffered']
    #allocation3 [shape = 's32[1]{0}', space=sflag, size = 0x4, scoped, tag = 'scoped memory for mask_forward.1']
    %6 = vsyncpa [#allocation3], 0
    // Predicated region
    $region2: #{mask_forward.1} parent=1 // pred_check
      _
    $region3: #{mask_forward.1} parent=1 // pred_check_branch
      %8 = sbr.rel (0) target = $region5
    $region4: #{mask_forward.1} parent=1 // pred_region
      %s10 = ssub.s32 32, 32
      %11 = vsyncadd [#allocation3], %s10
      %s13 = sshll.u32 [#allocation2], 4
      %s14 = int_to_ptr.vmem [resolvable:$true] %s13
      %16 = dma.hbm_to_vmem [thread:$0]  %s0, 32, %s14, [#allocation3]
    $region5: #{mask_forward.1} parent=1 // pred_fallthru
      _
    // Predicated region
    $region6: #{mask_forward.1} parent=1 // pred_check
      _
    $region7: #{mask_forward.1} parent=1 // pred_check_branch
      %18 = sbr.rel (0) target = $region9
    $region8: #{mask_forward.1} parent=1 // pred_region
      %19 = dma.done [#allocation3], 32
    $region9: #{mask_forward.1} parent=1 // pred_fallthru
      _
    %v20 = vld [vmem:[#allocation2] sm:$0x3]
    %vm21 = vcmask 58368
    %22 = vst.msk [vmem:[%s1] sm:$0x3] %vm21, %v20
    // Predicated region
    $region10: #{mask_forward.1} parent=1 // pred_check
      _
    $region11: #{mask_forward.1} parent=1 // pred_check_branch
      %24 = sbr.rel (0) target = $region13
    $region12: #{mask_forward.1} parent=1 // pred_region
      _
    $region13: #{mask_forward.1} parent=1 // pred_fallthru
      _
    // Predicated region
    $region14: #{mask_forward.1} parent=1 // pred_check
      _
    $region15: #{mask_forward.1} parent=1 // pred_check_branch
      %26 = sbr.rel (0) target = $region17
    $region16: #{mask_forward.1} parent=1 // pred_region
      _
    $region17: #{mask_forward.1} parent=1 // pred_fallthru
      _
    %27 = vsyncpa [#allocation3], 1

</llo_original>
